<compile_context>
chip_gen: v7x
topology: tpu7x:2x2x1
jax: 0.10.0
libtpu: 0.0.40
codegen_flags: <defaults>
</compile_context>

<pallas_src>
import functools

import jax
import jax.numpy as jnp
from jax.experimental import pallas as pl
from jax.experimental.pallas import tpu as pltpu

_LANE = 128
_TARGET_TILE_ELEMS = 512 * 1024      # ~2 MiB f32 per input block buffer
_PAD_LOGIT = -1e4                    # focal loss at (x=-1e4, y=0) is exactly 0 in f32

# Worst-case VMEM (per pallas_call): 2 inputs (+1 output on the 'none' path)
# double-buffered at ~2 MiB plus ~6 block-sized elementwise temporaries
# ~= 12 MiB (buffers) + 12 MiB (temporaries) ~= 24 MiB, under this cap on
# v5e/v6e (128 MiB physical) and v7x (64 MiB physical).
_COMPILER_PARAMS = pltpu.CompilerParams(
    dimension_semantics=("parallel",),
    vmem_limit_bytes=48 * 1024 * 1024,
)


# ----------------------------------------------------------------------------- kernels


def _focal_pow(base, gamma):
    """base ** gamma; small integer gammas become multiplies (no EUP pow)."""
    g = float(gamma)
    if g == 0.0:
        return jnp.ones_like(base)
    if g.is_integer() and 0 < g <= 8:
        out = base
        for _ in range(int(g) - 1):
            out = out * base
        return out
    # general (non-integer) gamma: clamp so a slightly-negative base (possible with
    # the approximate reciprocal) cannot produce NaN from pow.
    return jnp.power(jnp.maximum(base, 0.0), g)


def _focal_elementwise(x, y, alpha, gamma, approx):
    """Elementwise sigmoid focal loss on f32 values (runs inside the kernel)."""
    e = jnp.exp(-jnp.abs(x))                         # single EUP exp, reused twice
    # numerically stable BCE with logits: max(x,0) - x*y + log(1 + exp(-|x|))
    ce = jnp.maximum(x, 0.0) - x * y + jnp.log1p(e)
    denom = 1.0 + e
    if approx:
        d = pl.reciprocal(denom, approx=True)        # EUP vrcp, no Newton refinement
    else:
        d = 1.0 / denom                              # exact divide (parity checks)
    p = jnp.where(x >= 0.0, d, e * d)                # == sigmoid(x)
    t = p * y
    one_minus_pt = (p - t) + (y - t)                 # == 1 - p_t  (1 mul + 3 add/sub)
    loss = ce * _focal_pow(one_minus_pt, gamma)
    if alpha >= 0.0:                                 # static python branch (matches torch)
        loss = ((1.0 - alpha) + (2.0 * alpha - 1.0) * y) * loss
    return loss


def _partial_sums_8x128(loss):
    """Fold a (BR, C) f32 tile down to an (8, 128) tile of partial sums using only
    tile-aligned slices + VPU adds (no cross-lane/XLU reduction, no relayout).
    BR is a multiple of 8 and C a multiple of 128 by construction."""
    br, c = loss.shape
    acc = loss[:, 0:_LANE]
    for j in range(1, c // _LANE):                   # lane-group fold -> (BR, 128)
        acc = acc + loss[:, j * _LANE:(j + 1) * _LANE]
    out = acc[0:8, :]
    for r in range(1, br // 8):                      # sublane-group fold -> (8, 128)
        out = out + acc[r * 8:(r + 1) * 8, :]
    return out


def _focal_partial_kernel(pred_ref, label_ref, out_ref, *, alpha, gamma, approx,
                          rows_in_last):
    """sum/mean path: each grid step emits an (8, 128) tile of partial sums.  No
    grid-resident accumulator, so the grid axis is fully parallel (megacore)."""
    x = pred_ref[...].astype(jnp.float32)
    y = label_ref[...].astype(jnp.float32)
    loss = _focal_elementwise(x, y, alpha, gamma, approx)
    block_rows = loss.shape[0]

    if rows_in_last == block_rows:
        # every block is fully valid -> no masking anywhere
        out_ref[...] = _partial_sums_8x128(loss)
    else:
        is_last = pl.program_id(0) == pl.num_programs(0) - 1

        @pl.when(jnp.logical_not(is_last))
        def _():
            out_ref[...] = _partial_sums_8x128(loss)

        @pl.when(is_last)
        def _():
            # only the final (partial) block contains rows loaded out-of-bounds;
            # the where() also squashes any NaN/Inf computed from that stale VMEM.
            row = jax.lax.broadcasted_iota(jnp.int32, loss.shape, 0)
            out_ref[...] = _partial_sums_8x128(
                jnp.where(row < rows_in_last, loss, 0.0))


def _focal_map_kernel(pred_ref, label_ref, out_ref, *, alpha, gamma, approx):
    """'none' path: elementwise loss map.  A partial last block computes on stale
    VMEM rows, which is harmless because the op is purely elementwise and Pallas
    drops the out-of-bounds writes; do not add row-wise reductions here."""
    x = pred_ref[...].astype(jnp.float32)
    y = label_ref[...].astype(jnp.float32)
    out_ref[...] = _focal_elementwise(x, y, alpha, gamma, approx).astype(out_ref.dtype)


# ----------------------------------------------------------------------------- wrapper


def _plan_slab(n):
    """Pick (cols, padded_len): the widest lane-dense width that divides n (no pad);
    otherwise fall back to 128 lanes plus a pad to a multiple of (8*128)."""
    for cols in (2048, 1024, 512, 256, 128):
        if n % cols == 0 and n // cols >= 8:
            return cols, n
    cols = _LANE
    block = 8 * cols
    return cols, ((n + block - 1) // block) * block


def _sublane_align(*dtypes):
    """Sub-32-bit dtypes pack along sublanes: keep blocks at native packing so DMA
    and vst stay unmasked (f32 -> 8, bf16/f16 -> 16, int8/fp8 -> 32 rows)."""
    align = 8
    for dt in dtypes:
        itemsize = jnp.dtype(dt).itemsize
        if itemsize == 2:
            align = max(align, 16)
        elif itemsize == 1:
            align = max(align, 32)
    return align


def _pick_block_rows(rows, cols, align):
    target = max(align, (_TARGET_TILE_ELEMS // cols) // align * align)
    br = min((rows // align) * align, target)
    if br < 8:
        return 8                       # tiny input: one 8-row block (+ masked tail)
    # v7x megacore: keep the grid at >= 2 steps when the input is big enough so
    # both TensorCores get at least one block (no effect on single-TC v5e/v6e).
    if br * 2 > rows:
        half = ((rows // 2) // align) * align
        if half >= 8:
            br = half
    return br


def sigmoid_focal_loss(pred, label, alpha=-1.0, gamma=2.0, reduction="mean",
                       *, approx_sigmoid=True):
    """Pallas TPU sigmoid focal loss.

    `pred`/`label` are consumed in their native dtypes (cast to f32 inside the
    kernel); if the producer can emit `label` as bf16/int8, do so upstream --
    do NOT cast here, the sum/mean path is HBM-read-bound on v5e/v6e.
    `approx_sigmoid=True` uses pl.reciprocal(approx=True) for the sigmoid
    denominator (faster on v7x, slightly lower precision)."""
    if reduction not in ("none", "sum", "mean"):
        raise ValueError(f"unsupported reduction: {reduction}")
    orig_shape = pred.shape
    n = int(pred.size)

    x = pred.reshape(-1)        # free reshape, kept in native dtype (no f32 HBM copy)
    y = label.reshape(-1)

    cols, n_padded = _plan_slab(n)
    if n_padded != n:
        # rare path (element count not a multiple of 128).  Pad with a logit/label
        # pair whose focal loss is exactly 0, so no element mask is needed in-kernel.
        pad = n_padded - n
        x = jnp.pad(x, (0, pad), constant_values=_PAD_LOGIT)
        y = jnp.pad(y, (0, pad), constant_values=0)
    rows = n_padded // cols
    x2 = x.reshape(rows, cols)
    y2 = y.reshape(rows, cols)

    align = _sublane_align(pred.dtype, label.dtype)
    block_rows = _pick_block_rows(rows, cols, align)
    grid = (rows + block_rows - 1) // block_rows
    rows_in_last = rows - (grid - 1) * block_rows    # static: valid rows in final block

    in_specs = [
        pl.BlockSpec((block_rows, cols), lambda i: (i, 0)),
        pl.BlockSpec((block_rows, cols), lambda i: (i, 0)),
    ]
    in_bytes = n_padded * (jnp.dtype(pred.dtype).itemsize
                           + jnp.dtype(label.dtype).itemsize)

    if reduction == "none":
        out_bytes = n_padded * jnp.dtype(pred.dtype).itemsize
        out = pl.pallas_call(
            functools.partial(_focal_map_kernel, alpha=float(alpha),
                              gamma=float(gamma), approx=bool(approx_sigmoid)),
            out_shape=jax.ShapeDtypeStruct((rows, cols), pred.dtype),
            grid=(grid,),
            in_specs=in_specs,
            out_specs=pl.BlockSpec((block_rows, cols), lambda i: (i, 0)),
            compiler_params=_COMPILER_PARAMS,
            cost_estimate=pl.CostEstimate(
                flops=int(20 * n_padded),
                transcendentals=int(3 * n_padded),
                bytes_accessed=int(in_bytes + out_bytes)),
        )(x2, y2)
        flat = out.reshape(-1)
        if n_padded != n:
            flat = flat[:n]
        return flat.reshape(orig_shape)

    # sum/mean path: (8, 128) partial sums per block (lane-dense, ~16x less
    # writeback than an (8, cols) partial), final reduce done by XLA on a tiny array.
    out_bytes = grid * 8 * _LANE * 4
    partial = pl.pallas_call(
        functools.partial(
            _focal_partial_kernel, alpha=float(alpha), gamma=float(gamma),
            approx=bool(approx_sigmoid), rows_in_last=rows_in_last,
        ),
        out_shape=jax.ShapeDtypeStruct((grid * 8, _LANE), jnp.float32),
        grid=(grid,),
        in_specs=in_specs,
        out_specs=pl.BlockSpec((8, _LANE), lambda i: (i, 0)),
        compiler_params=_COMPILER_PARAMS,
        cost_estimate=pl.CostEstimate(
            flops=int(22 * n_padded),
            transcendentals=int(3 * n_padded),
            bytes_accessed=int(in_bytes + out_bytes)),
    )(x2, y2)

    total = jnp.sum(partial)
    if reduction == "mean":
        total = total / jnp.float32(n)
    return total


class SigmoidFocalLoss:
    """JAX/Pallas equivalent of the PyTorch SigmoidFocalLoss module (no params)."""

    def __init__(self, alpha=-1.0, gamma=2.0, reduction="mean"):
        self.alpha = alpha
        self.gamma = gamma
        self.reduction = reduction

    def __call__(self, pred, label):
        return sigmoid_focal_loss(pred, label, self.alpha, self.gamma, self.reduction)


# ----------------------------------------------------------------------------- reference


def _ref_sigmoid_focal_loss(pred, label, alpha, gamma, reduction):
    pred = pred.astype(jnp.float32)
    label = label.astype(jnp.float32)
    p = jax.nn.sigmoid(pred)
    ce = jnp.maximum(pred, 0.0) - pred * label + jnp.log1p(jnp.exp(-jnp.abs(pred)))
    p_t = p * label + (1.0 - p) * (1.0 - label)
    loss = ce * (1.0 - p_t) ** gamma
    if alpha >= 0:
        loss = (alpha * label + (1.0 - alpha) * (1.0 - label)) * loss
    if reduction == "mean":
        return loss.mean()
    if reduction == "sum":
        return loss.sum()
    return loss


if __name__ == "__main__":
    key = jax.random.PRNGKey(0)
    k1, k2, k3, k4, k5, k6, k7, k8 = jax.random.split(key, 8)

    # NCHW conv-style inputs, matching the PyTorch module's usage.
    pred = jax.random.normal(k1, (2, 4, 16, 16), dtype=jnp.float32)
    label = (jax.random.uniform(k2, (2, 4, 16, 16)) > 0.5).astype(jnp.float32)

    # ---- exact-sigmoid path: bit-accurate parity with the torch reference ----
    out = jax.block_until_ready(
        sigmoid_focal_loss(pred, label, -1.0, 2.0, "mean", approx_sigmoid=False))
    ref = _ref_sigmoid_focal_loss(pred, label, -1.0, 2.0, "mean")
    assert jnp.allclose(out, ref, rtol=1e-5, atol=1e-6), (out, ref)

    out2 = jax.block_until_ready(
        sigmoid_focal_loss(pred, label, 0.25, 2.0, "sum", approx_sigmoid=False))
    ref2 = _ref_sigmoid_focal_loss(pred, label, 0.25, 2.0, "sum")
    assert jnp.allclose(out2, ref2, rtol=1e-5, atol=1e-5), (out2, ref2)

    out3 = jax.block_until_ready(
        sigmoid_focal_loss(pred, label, -1.0, 2.0, "none", approx_sigmoid=False))
    ref3 = _ref_sigmoid_focal_loss(pred, label, -1.0, 2.0, "none")
    assert out3.shape == pred.shape
    assert jnp.allclose(out3, ref3, rtol=1e-5, atol=1e-6)

    # partial-final-block mask path (9 rows, block_rows=8 -> masked tail)
    pred4 = jax.random.normal(k3, (9, 128), dtype=jnp.float32)
    label4 = (jax.random.uniform(k4, (9, 128)) > 0.5).astype(jnp.float32)
    out4 = jax.block_until_ready(
        sigmoid_focal_loss(pred4, label4, 0.25, 2.0, "mean", approx_sigmoid=False))
    ref4 = _ref_sigmoid_focal_loss(pred4, label4, 0.25, 2.0, "mean")
    assert jnp.allclose(out4, ref4, rtol=1e-5, atol=1e-6), (out4, ref4)

    # zero-loss padding path (210 elements, not a multiple of 128)
    pred5 = jax.random.normal(k5, (3, 5, 14), dtype=jnp.float32)
    label5 = (jax.random.uniform(k6, (3, 5, 14)) > 0.5).astype(jnp.float32)
    out5 = jax.block_until_ready(
        sigmoid_focal_loss(pred5, label5, -1.0, 2.0, "sum", approx_sigmoid=False))
    ref5 = _ref_sigmoid_focal_loss(pred5, label5, -1.0, 2.0, "sum")
    assert jnp.allclose(out5, ref5, rtol=1e-5, atol=1e-5), (out5, ref5)

    # bf16 inputs: exercises dtype-aware sublane alignment; labels kept narrow.
    pred6 = jax.random.normal(k7, (2, 16, 32, 32), dtype=jnp.bfloat16)
    label6 = (jax.random.uniform(k8, (2, 16, 32, 32)) > 0.5).astype(jnp.bfloat16)
    out6 = jax.block_until_ready(
        sigmoid_focal_loss(pred6, label6, -1.0, 2.0, "mean", approx_sigmoid=False))
    ref6 = _ref_sigmoid_focal_loss(pred6, label6, -1.0, 2.0, "mean")
    assert jnp.allclose(out6, ref6, rtol=1e-5, atol=1e-6), (out6, ref6)

    # ---- default production path (approx reciprocal; faster on v7x) ----------
    # pl.reciprocal(approx=True) skips the Newton refinement, so compare at a
    # looser tolerance (per the review's correctness note).
    loss_mod = SigmoidFocalLoss()                    # alpha=-1, gamma=2, 'mean'
    out7 = jax.block_until_ready(loss_mod(pred, label))
    assert jnp.allclose(out7, ref, rtol=2e-2, atol=2e-3), (out7, ref)
    out8 = jax.block_until_ready(sigmoid_focal_loss(pred, label, 0.25, 2.0, "sum"))
    assert jnp.allclose(out8, ref2, rtol=2e-2, atol=2e-2), (out8, ref2)

    print("KERNEL_OK")
</pallas_src>

<mosaic_0001>
module attributes {stable_mosaic.version = 11 : i64} {
  func.func @_focal_partial_kernel(%arg0: i32, %arg1: memref<8x256xf32, #tpu.memory_space<vmem>>, %arg2: memref<8x256xf32, #tpu.memory_space<vmem>>, %arg3: memref<8x128xf32, #tpu.memory_space<vmem>>) attributes {dimension_semantics = [#tpu.dimension_semantics<parallel>], iteration_bounds = array<i64: 1>, scalar_prefetch = 0 : i64, scratch_operands = 0 : i64, tpu.core_type = #tpu.core_type<tc>, window_params = [{transform_indices = @transform_0, window_bounds = array<i64: 8, 256>}, {transform_indices = @transform_1, window_bounds = array<i64: 8, 256>}, {transform_indices = @transform_2, window_bounds = array<i64: 8, 128>}]} {
    %c0 = arith.constant 0 : index
    %c0_0 = arith.constant 0 : index
    %0 = vector.load %arg1[%c0, %c0_0] : memref<8x256xf32, #tpu.memory_space<vmem>>, vector<8x256xf32>
    %c0_1 = arith.constant 0 : index
    %c0_2 = arith.constant 0 : index
    %1 = vector.load %arg2[%c0_1, %c0_2] : memref<8x256xf32, #tpu.memory_space<vmem>>, vector<8x256xf32>
    %2 = math.absf %0 : vector<8x256xf32>
    %cst = arith.constant 0.000000e+00 : f32
    %3 = vector.broadcast %cst : f32 to vector<8x256xf32>
    %4 = arith.subf %3, %2 : vector<8x256xf32>
    %5 = math.exp %4 : vector<8x256xf32>
    %cst_3 = arith.constant 0.000000e+00 : f32
    %6 = vector.broadcast %cst_3 : f32 to vector<8x256xf32>
    %7 = arith.maximumf %0, %6 : vector<8x256xf32>
    %8 = arith.mulf %0, %1 : vector<8x256xf32>
    %9 = arith.subf %7, %8 : vector<8x256xf32>
    %10 = math.log1p %5 : vector<8x256xf32>
    %11 = arith.addf %9, %10 : vector<8x256xf32>
    %cst_4 = arith.constant 1.000000e+00 : f32
    %12 = vector.broadcast %cst_4 : f32 to vector<8x256xf32>
    %13 = arith.addf %12, %5 : vector<8x256xf32>
    %cst_5 = arith.constant 1.000000e+00 : f32
    %14 = vector.broadcast %cst_5 : f32 to vector<8x256xf32>
    %15 = arith.divf %14, %13 : vector<8x256xf32>
    %cst_6 = arith.constant 0.000000e+00 : f32
    %16 = vector.broadcast %cst_6 : f32 to vector<8x256xf32>
    %17 = arith.cmpf oge, %0, %16 : vector<8x256xf32>
    %18 = arith.mulf %5, %15 : vector<8x256xf32>
    %19 = arith.select %17, %15, %18 : vector<8x256xi1>, vector<8x256xf32>
    %20 = arith.mulf %19, %1 : vector<8x256xf32>
    %21 = arith.subf %19, %20 : vector<8x256xf32>
    %22 = arith.subf %1, %20 : vector<8x256xf32>
    %23 = arith.addf %21, %22 : vector<8x256xf32>
    %24 = arith.mulf %23, %23 : vector<8x256xf32>
    %25 = arith.mulf %11, %24 : vector<8x256xf32>
    %26 = vector.extract_strided_slice %25 {offsets = [0, 0], sizes = [8, 128], strides = [1, 1]} : vector<8x256xf32> to vector<8x128xf32>
    %27 = vector.extract_strided_slice %25 {offsets = [0, 128], sizes = [8, 128], strides = [1, 1]} : vector<8x256xf32> to vector<8x128xf32>
    %28 = arith.addf %26, %27 : vector<8x128xf32>
    %c0_7 = arith.constant 0 : index
    %c0_8 = arith.constant 0 : index
    %29 = vector.load %arg3[%c0_7, %c0_8] : memref<8x128xf32, #tpu.memory_space<vmem>>, vector<8x128xf32>
    tpu.vector_store %arg3[%c0_7, %c0_8], %28 {strides = array<i32>} : memref<8x128xf32, #tpu.memory_space<vmem>>, vector<8x128xf32>,
    return
  }
  func.func @transform_0(%arg0: i32) -> (i32, i32) {
    %c0_i32 = arith.constant 0 : i32
    %c0_i32_0 = arith.constant 0 : i32
    return %arg0, %c0_i32 : i32, i32
  }
  func.func @transform_1(%arg0: i32) -> (i32, i32) {
    %c0_i32 = arith.constant 0 : i32
    %c0_i32_0 = arith.constant 0 : i32
    return %arg0, %c0_i32 : i32, i32
  }
  func.func @transform_2(%arg0: i32) -> (i32, i32) {
    %c0_i32 = arith.constant 0 : i32
    %c0_i32_0 = arith.constant 0 : i32
    return %arg0, %c0_i32 : i32, i32
  }
}

</mosaic_0001>

<llo_original>
// kernel: tpu_custom_call.1
$region0: #{tpu_custom_call.1}
  #allocation0 [shape = 'u32[]', space=smem, size = 0x4, offset = 0x4, fixed_abs, tag = 'smem constant byte address 0x4 - core index']
  #allocation1 [shape = 'u32[144,128]{1,0:T(1,128)}', space=vmem, size = 0x12000, scoped, tag = 'internal scratch']
  %s0 = inlined_call_operand.hbm [shape: f32[8,256], index: 0, kind: input, shape index: {}]
  %s1 = inlined_call_operand.hbm [shape: f32[8,256], index: 1, kind: input, shape index: {}]
  %s2 = inlined_call_operand.hbm [shape: f32[8,128], index: 2, kind: output, shape index: {}]
  %s3 = sld [smem:[#allocation0]]
  $region26: #{tpu_custom_call.1} parent=0
    _
  %s5 = ssub.s32 1, %s3
  %s6 = scalar_select 0, %s5, %s3
  $region1: #{tpu_custom_call.1} parent=0
    #allocation2 [shape = 'u8[8192]{0}', space=vmem, size = 0x2000, scoped, tag = 'input window, operand 0, single buffered']
    #allocation3 [shape = 's32[1]{0}', space=sflag, size = 0x4, scoped, tag = 'scoped memory for tpu_custom_call.1']
    #allocation4 [shape = 's32[1]{0}', space=sflag, size = 0x4, scoped, tag = 'scoped memory for tpu_custom_call.1']
    #allocation5 [shape = 'u8[8192]{0}', space=vmem, size = 0x2000, scoped, tag = 'input window, operand 1, single buffered']
    #allocation6 [shape = 's32[1]{0}', space=sflag, size = 0x4, scoped, tag = 'scoped memory for tpu_custom_call.1']
    #allocation7 [shape = 'u8[4096]{0}', space=vmem, size = 0x1000, scoped, tag = 'output window, operand 0, single buffered']
    %7 = vsyncpa [#allocation3], 0
    %8 = vsyncpa [#allocation6], 0
    %9 = vsyncpa [#allocation4], 0
    // Predicated region
    $region2: #{tpu_custom_call.1} parent=1 // pred_check
      _
    $region3: #{tpu_custom_call.1} parent=1 // pred_check_branch
      %11 = sbr.rel (0) target = $region5
    $region4: #{tpu_custom_call.1} parent=1 // pred_region
      %s13 = ssub.s32 256, 256
      %14 = vsyncadd [#allocation3], %s13
      %s16 = sshll.u32 [#allocation2], 4
      %s17 = int_to_ptr.vmem [resolvable:$true] %s16
      %19 = dma.hbm_to_vmem [thread:$0]  %s0, 256, %s17, [#allocation3]
    $region5: #{tpu_custom_call.1} parent=1 // pred_fallthru
      _
    // Predicated region
    $region6: #{tpu_custom_call.1} parent=1 // pred_check
      _
    $region7: #{tpu_custom_call.1} parent=1 // pred_check_branch
      %21 = sbr.rel (0) target = $region9
    $region8: #{tpu_custom_call.1} parent=1 // pred_region
      %s23 = ssub.s32 256, 256
      %24 = vsyncadd [#allocation6], %s23
      %s26 = sshll.u32 [#allocation5], 4
      %s27 = int_to_ptr.vmem [resolvable:$true] %s26
      %29 = dma.hbm_to_vmem [thread:$0]  %s1, 256, %s27, [#allocation6]
    $region9: #{tpu_custom_call.1} parent=1 // pred_fallthru
      _
    // Predicated region
    $region10: #{tpu_custom_call.1} parent=1 // pred_check
      _
    $region11: #{tpu_custom_call.1} parent=1 // pred_check_branch
      %31 = sbr.rel (0) target = $region13
    $region12: #{tpu_custom_call.1} parent=1 // pred_region
      %32 = dma.done [#allocation3], 256
    $region13: #{tpu_custom_call.1} parent=1 // pred_fallthru
      _
    // Predicated region
    $region14: #{tpu_custom_call.1} parent=1 // pred_check
      _
    $region15: #{tpu_custom_call.1} parent=1 // pred_check_branch
      %34 = sbr.rel (0) target = $region17
    $region16: #{tpu_custom_call.1} parent=1 // pred_region
      %35 = dma.done [#allocation6], 256
    $region17: #{tpu_custom_call.1} parent=1 // pred_fallthru
      _
    %v36 = vld [vmem:[#allocation2] sm:$0xff]
    %v37 = vld [vmem:[#allocation2 + $0x8] sm:$0xff]
    %v38 = vld [vmem:[#allocation5] sm:$0xff]
    %v39 = vld [vmem:[#allocation5 + $0x8] sm:$0xff]
    %v40 = vand.u32 2147483647, %v36
    %v41 = vand.u32 2147483647, %v37
    %v42 = vsub.f32 0.0, %v40
    %v43 = vsub.f32 0.0, %v41
    %v44 = vmul.f32 %v42, 1.442695
    %v45 = vpow.pop %v44
    %v46 = vmul.f32 %v43, 1.442695
    %v47 = vpow.pop %v46
    %v48 = vmax.f32 %v36, 0.0
    %v49 = vmax.f32 %v37, 0.0
    %v50 = vmul.f32 %v36, %v38
    %v51 = vmul.f32 %v37, %v39
    %v52 = vsub.f32 %v48, %v50
    %v53 = vsub.f32 %v49, %v51
    %v54 = vadd.f32 %v45, 1.0
    %v55 = vlog2.pop %v54
    %v56 = vmul.f32 %v55, 0.6931472
    %v57 = vmul.f32 -0.5, %v45
    %v58 = vadd.f32 %v57, 1.0
    %v59 = vmul.f32 %v58, %v45
    %v60 = vand.u32 2147483647, %v45
    %vm61 = vcmp.lt.f32.partialorder %v60, 0.0004427343
    %v62 = vsel %vm61, %v59, %v56
    %v63 = vadd.f32 %v47, 1.0
    %v64 = vlog2.pop %v63
    %v65 = vmul.f32 %v64, 0.6931472
    %v66 = vmul.f32 -0.5, %v47
    %v67 = vadd.f32 %v66, 1.0
    %v68 = vmul.f32 %v67, %v47
    %v69 = vand.u32 2147483647, %v47
    %vm70 = vcmp.lt.f32.partialorder %v69, 0.0004427343
    %v71 = vsel %vm70, %v68, %v65
    %v72 = vadd.f32 %v52, %v62
    %v73 = vadd.f32 %v53, %v71
    %v74 = vadd.f32 %v45, 1.0
    %v75 = vadd.f32 %v47, 1.0
    %v76 = vrcp.pop %v74
    %v77 = vmul.f32 1.0, %v76
    %v78 = vrcp.pop %v75
    %v79 = vmul.f32 1.0, %v78
    %vm80 = vcmp.ge.f32.partialorder %v36, 0.0
    %vm81 = vcmp.ge.f32.partialorder %v37, 0.0
    %v82 = vmul.f32 %v45, %v77
    %v83 = vmul.f32 %v47, %v79
    %v84 = vsel %vm80, %v77, %v82
    %v85 = vsel %vm81, %v79, %v83
    %v86 = vmul.f32 %v84, %v38
    %v87 = vmul.f32 %v85, %v39
    %v88 = vsub.f32 %v84, %v86
    %v89 = vsub.f32 %v85, %v87
    %v90 = vsub.f32 %v38, %v86
    %v91 = vsub.f32 %v39, %v87
    %v92 = vadd.f32 %v88, %v90
    %v93 = vadd.f32 %v89, %v91
    %v94 = vmul.f32 %v92, %v92
    %v95 = vmul.f32 %v93, %v93
    %v96 = vmul.f32 %v72, %v94
    %v97 = vmul.f32 %v73, %v95
    %v98 = vadd.f32 %v96, %v97
    %99 = vst [vmem:[#allocation7] sm:$0xff] %v98
    // Predicated region
    $region18: #{tpu_custom_call.1} parent=1 // pred_check
      _
    $region19: #{tpu_custom_call.1} parent=1 // pred_check_branch
      %101 = sbr.rel (0) target = $region21
    $region20: #{tpu_custom_call.1} parent=1 // pred_region
      %s103 = ssub.s32 128, 128
      %104 = vsyncadd [#allocation4], %s103
      %s106 = sshll.u32 [#allocation7], 4
      %s107 = int_to_ptr.vmem [resolvable:$true] %s106
      %109 = dma.vmem_to_hbm [thread:$0]  %s107, 128, %s2, [#allocation4]
    $region21: #{tpu_custom_call.1} parent=1 // pred_fallthru
      _
    // Predicated region
    $region22: #{tpu_custom_call.1} parent=1 // pred_check
      _
    $region23: #{tpu_custom_call.1} parent=1 // pred_check_branch
      %111 = sbr.rel (0) target = $region25
    $region24: #{tpu_custom_call.1} parent=1 // pred_region
      %112 = dma.done [#allocation4], 128
    $region25: #{tpu_custom_call.1} parent=1 // pred_fallthru
      _
    %113 = vsyncpa [#allocation3], 1
    %114 = vsyncpa [#allocation6], 1
    %115 = vsyncpa [#allocation4], 1

</llo_original>
